<compile_context>
chip_gen: v6e
topology: v6e:2x2x1
jax: 0.10.0
libtpu: 0.0.40
codegen_flags: <defaults>
</compile_context>

<pallas_src>
import functools

import jax
import jax.numpy as jnp
from jax.experimental import pallas as pl
from jax.experimental.pallas import tpu as pltpu

HIDDEN = 128  # fixed by the module definition (nn.Linear(input_size, 128))


def _round_up(x, m):
    return (x + m - 1) // m * m


def _pick_batch_tile(batch, block_b):
    """Batch tile: multiple of 8 sublanes, multiple of 128 when possible, and
    sized so the grid has >=2 steps for moderate batches (v7x megacore)."""
    half = _round_up(max(pl.cdiv(batch, 2), 1), 128)
    tb = min(block_b, half)
    tb = min(tb, _round_up(batch, 8))
    return max(tb, 8)


def _c51_kernel(num_actions, num_atoms,
                x_ref, w1_ref, b1_ref, w2_ref, b2_ref, out_ref):
    """One batch tile: fc -> ReLU -> fc_value -> per-action softmax over atoms."""
    A, N = num_actions, num_atoms

    # --- fc + ReLU (MXU matmul in compute dtype, f32 accumulate; VPU max) ---
    h = jnp.dot(x_ref[...], w1_ref[...], preferred_element_type=jnp.float32)
    h = jnp.maximum(h + b1_ref[...], 0.0)                               # (tb, 128) f32

    # --- fc_value: compact A*N columns (no lane padding) ---
    logits = jnp.dot(h.astype(w2_ref.dtype), w2_ref[...],
                     preferred_element_type=jnp.float32) + b2_ref[...]  # (tb, A*N) f32

    # Per-action softmax on static lane slices; kernel stays 2-D (no lane->sublane
    # relayout), stores go to the compact (tb, A*N) output block.
    for a in range(A):  # A is small and static -> unrolled at trace time
        sl = logits[:, a * N:(a + 1) * N]                               # (tb, N)
        m = jnp.max(sl, axis=-1, keepdims=True)
        e = jnp.exp(sl - m)
        s = jnp.sum(e, axis=-1, keepdims=True)
        inv = pl.reciprocal(s, approx=True)          # EUP rcp slot ...
        inv = inv * (2.0 - s * inv)                  # ... + one Newton step -> f32 accuracy
        out_ref[:, a * N:(a + 1) * N] = (e * inv).astype(out_ref.dtype)


def prepare_c51_params(w1, b1, w2, b2, *, compute_dtype=jnp.bfloat16):
    """Hoisted out of the per-call path: cast weights once per weight update.
    Weights are stored pre-transposed as (in, out) so the kernel does x @ W.
    Biases stay f32 (added after the f32-accumulated matmul)."""
    return (jnp.asarray(w1, compute_dtype),
            jnp.asarray(b1, jnp.float32).reshape(1, -1),
            jnp.asarray(w2, compute_dtype),
            jnp.asarray(b2, jnp.float32).reshape(1, -1))


def categorical_dqn_forward(x, params, num_actions, num_atoms, *, block_b=1024):
    """x: (B, input_size); params from prepare_c51_params.
    Returns (B, A, N) f32 probabilities."""
    w1, b1, w2, b2 = params
    B, D = x.shape
    A, N = num_actions, num_atoms
    AN = A * N
    assert w1.shape == (D, HIDDEN), w1.shape
    assert w2.shape == (HIDDEN, AN), w2.shape

    tb = _pick_batch_tile(B, block_b)
    b_pad = _round_up(B, tb)
    xk = x.astype(w1.dtype)
    if b_pad != B:
        xk = jnp.pad(xk, ((0, b_pad - B), (0, 0)))
    grid = (b_pad // tb,)

    vmem = pltpu.MemorySpace.VMEM
    kernel = functools.partial(_c51_kernel, A, N)

    itemsize = jnp.dtype(w1.dtype).itemsize
    flops = 2 * b_pad * (D * HIDDEN + HIDDEN * AN) + 6 * b_pad * AN
    bytes_accessed = (b_pad * D * itemsize                     # x stream
                      + (D * HIDDEN + HIDDEN * AN) * itemsize  # weights (VMEM resident)
                      + (HIDDEN + AN) * 4                      # biases
                      + b_pad * AN * 4)                        # compact output writeback

    out = pl.pallas_call(
        kernel,
        out_shape=jax.ShapeDtypeStruct((b_pad, AN), jnp.float32),
        grid=grid,
        in_specs=[
            pl.BlockSpec((tb, D), lambda i: (i, 0), memory_space=vmem),       # x: streamed
            pl.BlockSpec((D, HIDDEN), lambda i: (0, 0), memory_space=vmem),   # w1: resident
            pl.BlockSpec((1, HIDDEN), lambda i: (0, 0), memory_space=vmem),   # b1: resident
            pl.BlockSpec((HIDDEN, AN), lambda i: (0, 0), memory_space=vmem),  # w2: resident
            pl.BlockSpec((1, AN), lambda i: (0, 0), memory_space=vmem),       # b2: resident
        ],
        out_specs=pl.BlockSpec((tb, AN), lambda i: (i, 0), memory_space=vmem),
        compiler_params=pltpu.CompilerParams(
            dimension_semantics=("parallel",)),          # megacore sharding on v7x
        cost_estimate=pl.CostEstimate(
            flops=flops,
            transcendentals=b_pad * AN + b_pad * A,
            bytes_accessed=bytes_accessed),
    )(xk, w1, b1, w2, b2)

    out = out[:B] if b_pad != B else out     # cheap batch strip only
    return out.reshape(B, A, N)              # free metadata reshape in XLA


def _reference(x, w1, b1, w2, b2, num_actions, num_atoms, compute_dtype=jnp.float32):
    xc = x.astype(compute_dtype)
    h = jax.nn.relu(jnp.dot(xc, w1.astype(compute_dtype),
                            preferred_element_type=jnp.float32) + b1)
    logits = jnp.dot(h.astype(compute_dtype), w2.astype(compute_dtype),
                     preferred_element_type=jnp.float32) + b2
    return jax.nn.softmax(logits.reshape(-1, num_actions, num_atoms), axis=-1)


if __name__ == "__main__":
    # Small, module-consistent shapes.
    batch = 2
    input_size = 16
    num_actions = 4
    num_atoms = 8
    v_min, v_max = -10.0, 10.0

    key = jax.random.PRNGKey(0)
    kx, k1, kb1, k2, kb2 = jax.random.split(key, 5)

    x = jax.random.normal(kx, (batch, input_size), dtype=jnp.float32)
    w1 = jax.random.normal(k1, (input_size, HIDDEN), dtype=jnp.float32) * 0.1
    b1 = jax.random.normal(kb1, (1, HIDDEN), dtype=jnp.float32) * 0.01
    w2 = jax.random.normal(k2, (HIDDEN, num_actions * num_atoms), dtype=jnp.float32) * 0.1
    b2 = jax.random.normal(kb2, (1, num_actions * num_atoms), dtype=jnp.float32) * 0.01

    # `support` (torch.linspace(v_min, v_max, num_atoms)) is a registered buffer
    # not used in forward(); kept only for completeness.
    support = jnp.linspace(v_min, v_max, num_atoms)

    # --- f32 path: bit-level parity with the PyTorch-style reference ---
    params_f32 = prepare_c51_params(w1, b1, w2, b2, compute_dtype=jnp.float32)
    out = categorical_dqn_forward(x, params_f32, num_actions, num_atoms)
    out = jax.block_until_ready(out)
    ref = _reference(x, w1, b1, w2, b2, num_actions, num_atoms, jnp.float32)
    assert out.shape == (batch, num_actions, num_atoms)
    assert jnp.allclose(out, ref, atol=1e-5, rtol=1e-5), float(jnp.max(jnp.abs(out - ref)))
    assert jnp.allclose(jnp.sum(out, axis=-1), 1.0, atol=1e-5)

    # --- bf16 path (default): larger batch -> >1 grid step, batch padding ---
    batch2 = 300
    x2 = jax.random.normal(jax.random.PRNGKey(1), (batch2, input_size), dtype=jnp.float32)
    params_bf16 = prepare_c51_params(w1, b1, w2, b2)  # bf16 matmul inputs by default
    out2 = categorical_dqn_forward(x2, params_bf16, num_actions, num_atoms, block_b=256)
    out2 = jax.block_until_ready(out2)
    ref2_same = _reference(x2, w1, b1, w2, b2, num_actions, num_atoms, jnp.bfloat16)
    ref2_f32 = _reference(x2, w1, b1, w2, b2, num_actions, num_atoms, jnp.float32)
    assert out2.shape == (batch2, num_actions, num_atoms)
    assert jnp.allclose(out2, ref2_same, atol=2e-3, rtol=1e-2), \
        float(jnp.max(jnp.abs(out2 - ref2_same)))
    assert jnp.allclose(out2, ref2_f32, atol=2e-2, rtol=1e-1), \
        float(jnp.max(jnp.abs(out2 - ref2_f32)))
    assert jnp.allclose(jnp.sum(out2, axis=-1), 1.0, atol=1e-5)

    print("KERNEL_OK")
</pallas_src>

<mosaic_0001>
module attributes {stable_mosaic.version = 11 : i64} {
  func.func @_c51_kernel(%arg0: i32, %arg1: memref<8x16xf32, #tpu.memory_space<vmem>>, %arg2: memref<16x128xf32, #tpu.memory_space<vmem>>, %arg3: memref<1x128xf32, #tpu.memory_space<vmem>>, %arg4: memref<128x32xf32, #tpu.memory_space<vmem>>, %arg5: memref<1x32xf32, #tpu.memory_space<vmem>>, %arg6: memref<8x32xf32, #tpu.memory_space<vmem>>) attributes {dimension_semantics = [#tpu.dimension_semantics<parallel>], iteration_bounds = array<i64: 1>, scalar_prefetch = 0 : i64, scratch_operands = 0 : i64, tpu.core_type = #tpu.core_type<tc>, window_params = [{transform_indices = @transform_0, window_bounds = array<i64: 8, 16>}, {pipeline_mode = #tpu.pipeline_mode<synchronous>, transform_indices = @transform_1, window_bounds = array<i64: 16, 128>}, {pipeline_mode = #tpu.pipeline_mode<synchronous>, transform_indices = @transform_2, window_bounds = array<i64: 1, 128>}, {pipeline_mode = #tpu.pipeline_mode<synchronous>, transform_indices = @transform_3, window_bounds = array<i64: 128, 32>}, {pipeline_mode = #tpu.pipeline_mode<synchronous>, transform_indices = @transform_4, window_bounds = array<i64: 1, 32>}, {transform_indices = @transform_5, window_bounds = array<i64: 8, 32>}]} {
    %c0 = arith.constant 0 : index
    %c0_0 = arith.constant 0 : index
    %0 = vector.load %arg1[%c0, %c0_0] : memref<8x16xf32, #tpu.memory_space<vmem>>, vector<8x16xf32>
    %c0_1 = arith.constant 0 : index
    %c0_2 = arith.constant 0 : index
    %1 = vector.load %arg2[%c0_1, %c0_2] : memref<16x128xf32, #tpu.memory_space<vmem>>, vector<16x128xf32>
    %cst = arith.constant dense<0.000000e+00> : vector<8x128xf32>
    %2 = tpu.matmul %0, %1, %cst {dimension_numbers = #tpu.dot_dimension_numbers<[1], [0], [0], [1], [0, 0, 1, 1], [], []>} : vector<8x16xf32>, vector<16x128xf32>, vector<8x128xf32> -> vector<8x128xf32>
    %c0_3 = arith.constant 0 : index
    %c0_4 = arith.constant 0 : index
    %3 = vector.load %arg3[%c0_3, %c0_4] : memref<1x128xf32, #tpu.memory_space<vmem>>, vector<1x128xf32>
    %4 = vector.broadcast %3 : vector<1x128xf32> to vector<8x128xf32>
    %5 = arith.addf %2, %4 : vector<8x128xf32>
    %cst_5 = arith.constant 0.000000e+00 : f32
    %6 = vector.broadcast %cst_5 : f32 to vector<8x128xf32>
    %7 = arith.maximumf %5, %6 : vector<8x128xf32>
    %c0_6 = arith.constant 0 : index
    %c0_7 = arith.constant 0 : index
    %8 = vector.load %arg4[%c0_6, %c0_7] : memref<128x32xf32, #tpu.memory_space<vmem>>, vector<128x32xf32>
    %cst_8 = arith.constant dense<0.000000e+00> : vector<8x32xf32>
    %9 = tpu.matmul %7, %8, %cst_8 {dimension_numbers = #tpu.dot_dimension_numbers<[1], [0], [0], [1], [0, 0, 1, 1], [], []>} : vector<8x128xf32>, vector<128x32xf32>, vector<8x32xf32> -> vector<8x32xf32>
    %c0_9 = arith.constant 0 : index
    %c0_10 = arith.constant 0 : index
    %10 = vector.load %arg5[%c0_9, %c0_10] : memref<1x32xf32, #tpu.memory_space<vmem>>, vector<1x32xf32>
    %11 = vector.broadcast %10 : vector<1x32xf32> to vector<8x32xf32>
    %12 = arith.addf %9, %11 : vector<8x32xf32>
    %13 = vector.extract_strided_slice %12 {offsets = [0, 0], sizes = [8, 8], strides = [1, 1]} : vector<8x32xf32> to vector<8x8xf32>
    %cst_11 = arith.constant dense<0xFF800000> : vector<8xf32>
    %14 = vector.multi_reduction <maximumf>, %13, %cst_11 [1] : vector<8x8xf32> to vector<8xf32>
    %15 = vector.shape_cast %14 : vector<8xf32> to vector<8x1xf32>
    %16 = vector.broadcast %15 : vector<8x1xf32> to vector<8x8xf32>
    %17 = arith.subf %13, %16 : vector<8x8xf32>
    %18 = math.exp %17 : vector<8x8xf32>
    %cst_12 = arith.constant dense<0.000000e+00> : vector<8xf32>
    %19 = vector.multi_reduction <add>, %18, %cst_12 [1] : vector<8x8xf32> to vector<8xf32>
    %20 = vector.shape_cast %19 : vector<8xf32> to vector<8x1xf32>
    %21 = tpu.reciprocal %20 {approx = true} : vector<8x1xf32> -> vector<8x1xf32>
    %22 = arith.mulf %20, %21 : vector<8x1xf32>
    %cst_13 = arith.constant 2.000000e+00 : f32
    %23 = vector.broadcast %cst_13 : f32 to vector<8x1xf32>
    %24 = arith.subf %23, %22 : vector<8x1xf32>
    %25 = arith.mulf %21, %24 : vector<8x1xf32>
    %26 = vector.broadcast %25 : vector<8x1xf32> to vector<8x8xf32>
    %27 = arith.mulf %18, %26 : vector<8x8xf32>
    %c0_14 = arith.constant 0 : index
    %c0_15 = arith.constant 0 : index
    %28 = vector.load %arg6[%c0_14, %c0_15] : memref<8x32xf32, #tpu.memory_space<vmem>>, vector<8x8xf32>
    tpu.vector_store %arg6[%c0_14, %c0_15], %27 {strides = array<i32>} : memref<8x32xf32, #tpu.memory_space<vmem>>, vector<8x8xf32>,
    %29 = vector.extract_strided_slice %12 {offsets = [0, 8], sizes = [8, 8], strides = [1, 1]} : vector<8x32xf32> to vector<8x8xf32>
    %cst_16 = arith.constant dense<0xFF800000> : vector<8xf32>
    %30 = vector.multi_reduction <maximumf>, %29, %cst_16 [1] : vector<8x8xf32> to vector<8xf32>
    %31 = vector.shape_cast %30 : vector<8xf32> to vector<8x1xf32>
    %32 = vector.broadcast %31 : vector<8x1xf32> to vector<8x8xf32>
    %33 = arith.subf %29, %32 : vector<8x8xf32>
    %34 = math.exp %33 : vector<8x8xf32>
    %cst_17 = arith.constant dense<0.000000e+00> : vector<8xf32>
    %35 = vector.multi_reduction <add>, %34, %cst_17 [1] : vector<8x8xf32> to vector<8xf32>
    %36 = vector.shape_cast %35 : vector<8xf32> to vector<8x1xf32>
    %37 = tpu.reciprocal %36 {approx = true} : vector<8x1xf32> -> vector<8x1xf32>
    %38 = arith.mulf %36, %37 : vector<8x1xf32>
    %cst_18 = arith.constant 2.000000e+00 : f32
    %39 = vector.broadcast %cst_18 : f32 to vector<8x1xf32>
    %40 = arith.subf %39, %38 : vector<8x1xf32>
    %41 = arith.mulf %37, %40 : vector<8x1xf32>
    %42 = vector.broadcast %41 : vector<8x1xf32> to vector<8x8xf32>
    %43 = arith.mulf %34, %42 : vector<8x8xf32>
    %c0_19 = arith.constant 0 : index
    %c8 = arith.constant 8 : index
    %44 = vector.load %arg6[%c0_19, %c8] : memref<8x32xf32, #tpu.memory_space<vmem>>, vector<8x8xf32>
    tpu.vector_store %arg6[%c0_19, %c8], %43 {strides = array<i32>} : memref<8x32xf32, #tpu.memory_space<vmem>>, vector<8x8xf32>,
    %45 = vector.extract_strided_slice %12 {offsets = [0, 16], sizes = [8, 8], strides = [1, 1]} : vector<8x32xf32> to vector<8x8xf32>
    %cst_20 = arith.constant dense<0xFF800000> : vector<8xf32>
    %46 = vector.multi_reduction <maximumf>, %45, %cst_20 [1] : vector<8x8xf32> to vector<8xf32>
    %47 = vector.shape_cast %46 : vector<8xf32> to vector<8x1xf32>
    %48 = vector.broadcast %47 : vector<8x1xf32> to vector<8x8xf32>
    %49 = arith.subf %45, %48 : vector<8x8xf32>
    %50 = math.exp %49 : vector<8x8xf32>
    %cst_21 = arith.constant dense<0.000000e+00> : vector<8xf32>
    %51 = vector.multi_reduction <add>, %50, %cst_21 [1] : vector<8x8xf32> to vector<8xf32>
    %52 = vector.shape_cast %51 : vector<8xf32> to vector<8x1xf32>
    %53 = tpu.reciprocal %52 {approx = true} : vector<8x1xf32> -> vector<8x1xf32>
    %54 = arith.mulf %52, %53 : vector<8x1xf32>
    %cst_22 = arith.constant 2.000000e+00 : f32
    %55 = vector.broadcast %cst_22 : f32 to vector<8x1xf32>
    %56 = arith.subf %55, %54 : vector<8x1xf32>
    %57 = arith.mulf %53, %56 : vector<8x1xf32>
    %58 = vector.broadcast %57 : vector<8x1xf32> to vector<8x8xf32>
    %59 = arith.mulf %50, %58 : vector<8x8xf32>
    %c0_23 = arith.constant 0 : index
    %c16 = arith.constant 16 : index
    %60 = vector.load %arg6[%c0_23, %c16] : memref<8x32xf32, #tpu.memory_space<vmem>>, vector<8x8xf32>
    tpu.vector_store %arg6[%c0_23, %c16], %59 {strides = array<i32>} : memref<8x32xf32, #tpu.memory_space<vmem>>, vector<8x8xf32>,
    %61 = vector.extract_strided_slice %12 {offsets = [0, 24], sizes = [8, 8], strides = [1, 1]} : vector<8x32xf32> to vector<8x8xf32>
    %cst_24 = arith.constant dense<0xFF800000> : vector<8xf32>
    %62 = vector.multi_reduction <maximumf>, %61, %cst_24 [1] : vector<8x8xf32> to vector<8xf32>
    %63 = vector.shape_cast %62 : vector<8xf32> to vector<8x1xf32>
    %64 = vector.broadcast %63 : vector<8x1xf32> to vector<8x8xf32>
    %65 = arith.subf %61, %64 : vector<8x8xf32>
    %66 = math.exp %65 : vector<8x8xf32>
    %cst_25 = arith.constant dense<0.000000e+00> : vector<8xf32>
    %67 = vector.multi_reduction <add>, %66, %cst_25 [1] : vector<8x8xf32> to vector<8xf32>
    %68 = vector.shape_cast %67 : vector<8xf32> to vector<8x1xf32>
    %69 = tpu.reciprocal %68 {approx = true} : vector<8x1xf32> -> vector<8x1xf32>
    %70 = arith.mulf %68, %69 : vector<8x1xf32>
    %cst_26 = arith.constant 2.000000e+00 : f32
    %71 = vector.broadcast %cst_26 : f32 to vector<8x1xf32>
    %72 = arith.subf %71, %70 : vector<8x1xf32>
    %73 = arith.mulf %69, %72 : vector<8x1xf32>
    %74 = vector.broadcast %73 : vector<8x1xf32> to vector<8x8xf32>
    %75 = arith.mulf %66, %74 : vector<8x8xf32>
    %c0_27 = arith.constant 0 : index
    %c24 = arith.constant 24 : index
    %76 = vector.load %arg6[%c0_27, %c24] : memref<8x32xf32, #tpu.memory_space<vmem>>, vector<8x8xf32>
    tpu.vector_store %arg6[%c0_27, %c24], %75 {strides = array<i32>} : memref<8x32xf32, #tpu.memory_space<vmem>>, vector<8x8xf32>,
    return
  }
  func.func @transform_0(%arg0: i32) -> (i32, i32) {
    %c0_i32 = arith.constant 0 : i32
    %c0_i32_0 = arith.constant 0 : i32
    return %arg0, %c0_i32 : i32, i32
  }
  func.func @transform_1(%arg0: i32) -> (i32, i32) {
    %c0_i32 = arith.constant 0 : i32
    %c0_i32_0 = arith.constant 0 : i32
    %c0_i32_1 = arith.constant 0 : i32
    return %c0_i32, %c0_i32_0 : i32, i32
  }
  func.func @transform_2(%arg0: i32) -> (i32, i32) {
    %c0_i32 = arith.constant 0 : i32
    %c0_i32_0 = arith.constant 0 : i32
    %c0_i32_1 = arith.constant 0 : i32
    return %c0_i32, %c0_i32_0 : i32, i32
  }
  func.func @transform_3(%arg0: i32) -> (i32, i32) {
    %c0_i32 = arith.constant 0 : i32
    %c0_i32_0 = arith.constant 0 : i32
    %c0_i32_1 = arith.constant 0 : i32
    return %c0_i32, %c0_i32_0 : i32, i32
  }
  func.func @transform_4(%arg0: i32) -> (i32, i32) {
    %c0_i32 = arith.constant 0 : i32
    %c0_i32_0 = arith.constant 0 : i32
    %c0_i32_1 = arith.constant 0 : i32
    return %c0_i32, %c0_i32_0 : i32, i32
  }
  func.func @transform_5(%arg0: i32) -> (i32, i32) {
    %c0_i32 = arith.constant 0 : i32
    %c0_i32_0 = arith.constant 0 : i32
    return %arg0, %c0_i32 : i32, i32
  }
}

</mosaic_0001>

<llo_original>
// kernel: tpu_custom_call.1
$region0: #{tpu_custom_call.1}
  #allocation0 [shape = 'u32[]', space=smem, size = 0x4, offset = 0x4, fixed_abs, tag = 'smem constant byte address 0x4 - core index']
  #allocation1 [shape = 'u32[144,128]{1,0:T(1,128)}', space=vmem, size = 0x12000, scoped, tag = 'internal scratch']
  %s0 = inlined_call_operand.vmem [shape: f32[8,16], index: 0, kind: input, shape index: {}]
  %s1 = inlined_call_operand.vmem [shape: f32[16,128], index: 1, kind: input, shape index: {}]
  %s2 = inlined_call_operand.vmem [shape: f32[1,128], index: 2, kind: input, shape index: {}]
  %s3 = inlined_call_operand.vmem [shape: f32[128,32], index: 3, kind: input, shape index: {}]
  %s4 = inlined_call_operand.vmem [shape: f32[1,32], index: 4, kind: input, shape index: {}]
  %s5 = inlined_call_operand.hbm [shape: f32[8,32], index: 5, kind: output, shape index: {}]
  %s6 = sld [smem:[#allocation0]]
  $region30: #{tpu_custom_call.1} parent=0
    _
  %s8 = ssub.s32 1, %s6
  %s9 = scalar_select 0, %s8, %s6
  $region1: #{tpu_custom_call.1} parent=0
    #allocation2 [shape = 'u8[4096]{0}', space=vmem, size = 0x1000, scoped, tag = 'output window, operand 0, single buffered']
    #allocation3 [shape = 's32[1]{0}', space=sflag, size = 0x4, scoped, tag = 'scoped memory for tpu_custom_call.1']
    %10 = vsyncpa [#allocation3], 0
    // Predicated region
    $region2: #{tpu_custom_call.1} parent=1 // pred_check
      _
    $region3: #{tpu_custom_call.1} parent=1 // pred_check_branch
      %12 = sbr.rel (0) target = $region5
    $region4: #{tpu_custom_call.1} parent=1 // pred_region
      _
    $region5: #{tpu_custom_call.1} parent=1 // pred_fallthru
      _
    // Predicated region
    $region6: #{tpu_custom_call.1} parent=1 // pred_check
      _
    $region7: #{tpu_custom_call.1} parent=1 // pred_check_branch
      %14 = sbr.rel (0) target = $region9
    $region8: #{tpu_custom_call.1} parent=1 // pred_region
      _
    $region9: #{tpu_custom_call.1} parent=1 // pred_fallthru
      _
    // Predicated region
    $region10: #{tpu_custom_call.1} parent=1 // pred_check
      _
    $region11: #{tpu_custom_call.1} parent=1 // pred_check_branch
      %16 = sbr.rel (0) target = $region13
    $region12: #{tpu_custom_call.1} parent=1 // pred_region
      _
    $region13: #{tpu_custom_call.1} parent=1 // pred_fallthru
      _
    // Predicated region
    $region14: #{tpu_custom_call.1} parent=1 // pred_check
      _
    $region15: #{tpu_custom_call.1} parent=1 // pred_check_branch
      %18 = sbr.rel (0) target = $region17
    $region16: #{tpu_custom_call.1} parent=1 // pred_region
      _
    $region17: #{tpu_custom_call.1} parent=1 // pred_fallthru
      _
    // Predicated region
    $region18: #{tpu_custom_call.1} parent=1 // pred_check
      _
    $region19: #{tpu_custom_call.1} parent=1 // pred_check_branch
      %20 = sbr.rel (0) target = $region21
    $region20: #{tpu_custom_call.1} parent=1 // pred_region
      _
    $region21: #{tpu_custom_call.1} parent=1 // pred_fallthru
      _
    %v21 = vld [vmem:[%s0] sm:$0xff]
    %v22 = vld [vmem:[%s1] sm:$0xff]
    %v23 = vld [vmem:[%s1 + $0x8] sm:$0xff]
    %v24 = vld [vmem:[%s2] sm:$0x1]
    %v26 = vlaneseq
    %v27 = vshrl.u32 %v26, 7
    %v28 = vsub.s32 0, %v27
    %v29 = vrot.slane %v24, %v28
    %vm31 = vcmask 130048
    %v33 = vsel %vm31, %v21, 0
    %35 = vmatprep.subr.mxu0 0.0
    %36 = vmatpush1.msra.mxu0 0.0
    %37 = vmatprep.subr.mxu0 0.0
    %38 = vmatpush1.msra.mxu0 0.0
    %39 = vmatprep.subr.mxu0 0.0
    %40 = vmatpush1.msra.mxu0 0.0
    %41 = vmatprep.subr.mxu0 0.0
    %42 = vmatpush1.msra.mxu0 0.0
    %43 = vmatprep.subr.mxu0 0.0
    %44 = vmatpush1.msra.mxu0 0.0
    %45 = vmatprep.subr.mxu0 0.0
    %46 = vmatpush1.msra.mxu0 0.0
    %47 = vmatprep.subr.mxu0 0.0
    %48 = vmatpush1.msra.mxu0 0.0
    %49 = vmatprep.subr.mxu0 0.0
    %50 = vmatpush1.msra.mxu0 0.0
    %51 = vmatprep.subr.mxu0 0.0
    %52 = vmatpush1.msra.mxu0 0.0
    %53 = vmatprep.subr.mxu0 0.0
    %54 = vmatpush1.msra.mxu0 0.0
    %55 = vmatprep.subr.mxu0 0.0
    %56 = vmatpush1.msra.mxu0 0.0
    %57 = vmatprep.subr.mxu0 0.0
    %58 = vmatpush1.msra.mxu0 0.0
    %59 = vmatprep.subr.mxu0 0.0
    %60 = vmatpush1.msra.mxu0 0.0
    %61 = vmatprep.subr.mxu0 0.0
    %62 = vmatpush1.msra.mxu0 0.0
    %63 = vmatprep.subr.mxu0 0.0
    %64 = vmatpush1.msra.mxu0 %v23
    %65 = vmatprep.subr.mxu0 0.0
    %66 = vmatpush1.msra.mxu0 %v22
    %67 = vmatprep.subr.mxu0 0.0
    %68 = vmatpush2.msra.mxu0 0.0
    %69 = vmatprep.subr.mxu0 0.0
    %70 = vmatpush2.msra.mxu0 0.0
    %71 = vmatprep.subr.mxu0 0.0
    %72 = vmatpush2.msra.mxu0 0.0
    %73 = vmatprep.subr.mxu0 0.0
    %74 = vmatpush2.msra.mxu0 0.0
    %75 = vmatprep.subr.mxu0 0.0
    %76 = vmatpush2.msra.mxu0 0.0
    %77 = vmatprep.subr.mxu0 0.0
    %78 = vmatpush2.msra.mxu0 0.0
    %79 = vmatprep.subr.mxu0 0.0
    %80 = vmatpush2.msra.mxu0 0.0
    %81 = vmatprep.subr.mxu0 0.0
    %82 = vmatpush2.msra.mxu0 0.0
    %83 = vmatprep.subr.mxu0 0.0
    %84 = vmatpush2.msra.mxu0 0.0
    %85 = vmatprep.subr.mxu0 0.0
    %86 = vmatpush2.msra.mxu0 0.0
    %87 = vmatprep.subr.mxu0 0.0
    %88 = vmatpush2.msra.mxu0 0.0
    %89 = vmatprep.subr.mxu0 0.0
    %90 = vmatpush2.msra.mxu0 0.0
    %91 = vmatprep.subr.mxu0 0.0
    %92 = vmatpush2.msra.mxu0 0.0
    %93 = vmatprep.subr.mxu0 0.0
    %94 = vmatpush2.msra.mxu0 0.0
    %95 = vmatprep.subr.mxu0 0.0
    %96 = vmatpush2.msra.mxu0 0.0
    %97 = vmatprep.subr.mxu0 0.0
    %98 = vmatpush2.msra.mxu0 0.0
    %99 = vmatprep.mubr.f32.mxu0 0.0
    %100 = vmatmul.mubr.f32.gmra.mxu0 %v33
    %v101 = vpop.f32.mrf.mxu0
    %v102 = vadd.f32 %v29, %v101
    %v103 = vpop.f32.mrf.mxu0
    %104 = vdwg.mxu0
    %v105 = vmax.f32 %v102, 0.0
    %v106 = vld [vmem:[%s3] sm:$0xff]
    %v107 = vld [vmem:[%s3 + $0x8] sm:$0xff]
    %v108 = vld [vmem:[%s3 + $0x10] sm:$0xff]
    %v109 = vld [vmem:[%s3 + $0x18] sm:$0xff]
    %v110 = vld [vmem:[%s3 + $0x20] sm:$0xff]
    %v111 = vld [vmem:[%s3 + $0x28] sm:$0xff]
    %v112 = vld [vmem:[%s3 + $0x30] sm:$0xff]
    %v113 = vld [vmem:[%s3 + $0x38] sm:$0xff]
    %v114 = vld [vmem:[%s3 + $0x40] sm:$0xff]
    %v115 = vld [vmem:[%s3 + $0x48] sm:$0xff]
    %v116 = vld [vmem:[%s3 + $0x50] sm:$0xff]
    %v117 = vld [vmem:[%s3 + $0x58] sm:$0xff]
    %v118 = vld [vmem:[%s3 + $0x60] sm:$0xff]
    %v119 = vld [vmem:[%s3 + $0x68] sm:$0xff]
    %v120 = vld [vmem:[%s3 + $0x70] sm:$0xff]
    %v121 = vld [vmem:[%s3 + $0x78] sm:$0xff]
    %v122 = vld [vmem:[%s4] sm:$0x1]
    %v124 = vlaneseq
    %v125 = vshrl.u32 %v124, 7
    %v126 = vsub.s32 0, %v125
    %v127 = vrot.slane %v122, %v126
    %129 = vmatprep.subr.mxu0 0.0
    %130 = vmatpush1.msra.mxu0 %v121
    %131 = vmatprep.subr.mxu0 0.0
    %132 = vmatpush1.msra.mxu0 %v120
    %133 = vmatprep.subr.mxu0 0.0
    %134 = vmatpush1.msra.mxu0 %v119
    %135 = vmatprep.subr.mxu0 0.0
    %136 = vmatpush1.msra.mxu0 %v118
    %137 = vmatprep.subr.mxu0 0.0
    %138 = vmatpush1.msra.mxu0 %v117
    %139 = vmatprep.subr.mxu0 0.0
    %140 = vmatpush1.msra.mxu0 %v116
    %141 = vmatprep.subr.mxu0 0.0
    %142 = vmatpush1.msra.mxu0 %v115
    %143 = vmatprep.subr.mxu0 0.0
    %144 = vmatpush1.msra.mxu0 %v114
    %145 = vmatprep.subr.mxu0 0.0
    %146 = vmatpush1.msra.mxu0 %v113
    %147 = vmatprep.subr.mxu0 0.0
    %148 = vmatpush1.msra.mxu0 %v112
    %149 = vmatprep.subr.mxu0 0.0
    %150 = vmatpush1.msra.mxu0 %v111
    %151 = vmatprep.subr.mxu0 0.0
    %152 = vmatpush1.msra.mxu0 %v110
    %153 = vmatprep.subr.mxu0 0.0
    %154 = vmatpush1.msra.mxu0 %v109
    %155 = vmatprep.subr.mxu0 0.0
    %156 = vmatpush1.msra.mxu0 %v108
    %157 = vmatprep.subr.mxu0 0.0
    %158 = vmatpush1.msra.mxu0 %v107
    %159 = vmatprep.subr.mxu0 0.0
    %160 = vmatpush1.msra.mxu0 %v106
    %161 = vmatprep.subr.mxu0 0.0
    %162 = vmatpush2.msra.mxu0 0.0
    %163 = vmatprep.subr.mxu0 0.0
    %164 = vmatpush2.msra.mxu0 0.0
    %165 = vmatprep.subr.mxu0 0.0
    %166 = vmatpush2.msra.mxu0 0.0
    %167 = vmatprep.subr.mxu0 0.0
    %168 = vmatpush2.msra.mxu0 0.0
    %169 = vmatprep.subr.mxu0 0.0
    %170 = vmatpush2.msra.mxu0 0.0
    %171 = vmatprep.subr.mxu0 0.0
    %172 = vmatpush2.msra.mxu0 0.0
    %173 = vmatprep.subr.mxu0 0.0
    %174 = vmatpush2.msra.mxu0 0.0
    %175 = vmatprep.subr.mxu0 0.0
    %176 = vmatpush2.msra.mxu0 0.0
    %177 = vmatprep.subr.mxu0 0.0
    %178 = vmatpush2.msra.mxu0 0.0
    %179 = vmatprep.subr.mxu0 0.0
    %180 = vmatpush2.msra.mxu0 0.0
    %181 = vmatprep.subr.mxu0 0.0
    %182 = vmatpush2.msra.mxu0 0.0
    %183 = vmatprep.subr.mxu0 0.0
    %184 = vmatpush2.msra.mxu0 0.0
    %185 = vmatprep.subr.mxu0 0.0
    %186 = vmatpush2.msra.mxu0 0.0
    %187 = vmatprep.subr.mxu0 0.0
    %188 = vmatpush2.msra.mxu0 0.0
    %189 = vmatprep.subr.mxu0 0.0
    %190 = vmatpush2.msra.mxu0 0.0
    %191 = vmatprep.subr.mxu0 0.0
    %192 = vmatpush2.msra.mxu0 0.0
    %193 = vmatprep.mubr.f32.mxu0 0.0
    %194 = vmatmul.mubr.f32.gmra.mxu0 %v105
    %v195 = vpop.f32.mrf.mxu0
    %v196 = vadd.f32 %v127, %v195
    %v197 = vpop.f32.mrf.mxu0
    %198 = vdwg.mxu0
    %vm199 = vcmask 64512
    %v200 = vsel %vm199, %v196, -inf
    %201 = vmax.xlane.f32.xlu0 %v200
    %v202 = vpop.xlane.xlu0 %201
    %v203 = vsub.f32 %v196, %v202
    %v204 = vmul.f32 %v203, 1.442695
    %v205 = vpow.pop %v204
    %v206 = vsel %vm199, %v205, 0.0
    %207 = vadd.xlane.f32.xlu0 %v206
    %v208 = vpop.xlane.xlu0 %207
    %v209 = vrcp.pop %v208
    %v210 = vmul.f32 %v208, %v209
    %v211 = vsub.f32 2.0, %v210
    %v212 = vmul.f32 %v209, %v211
    %v213 = vmul.f32 %v205, %v212
    %214 = vst.msk [vmem:[#allocation2] sm:$0xff] %vm199, %v213
    %vm215 = vcmask 130112
    %v216 = vsel %vm215, %v196, -inf
    %217 = vmax.xlane.f32.xlu0 %v216
    %v218 = vpop.xlane.xlu0 %217
    %v219 = vsub.f32 %v196, %v218
    %v220 = vmul.f32 %v219, 1.442695
    %v221 = vpow.pop %v220
    %223 = vrot.lane.b32.xlu0 %v221, 120
    %v224 = vpop.permute.xlu0 %223
    %v226 = vsel %vm199, %v224, 0.0
    %227 = vadd.xlane.f32.xlu0 %v226
    %v228 = vpop.xlane.xlu0 %227
    %v229 = vrcp.pop %v228
    %v230 = vmul.f32 %v228, %v229
    %v231 = vsub.f32 2.0, %v230
    %v232 = vmul.f32 %v229, %v231
    %v233 = vmul.f32 %v221, %v232
    %234 = vst.msk [vmem:[#allocation2] sm:$0xff] %vm215, %v233
    %vm235 = vcmask 195712
    %v236 = vsel %vm235, %v196, -inf
    %237 = vmax.xlane.f32.xlu0 %v236
    %v238 = vpop.xlane.xlu0 %237
    %v239 = vsub.f32 %v196, %v238
    %v240 = vmul.f32 %v239, 1.442695
    %v241 = vpow.pop %v240
    %243 = vrot.lane.b32.xlu0 %v241, 112
    %v244 = vpop.permute.xlu0 %243
    %v246 = vsel %vm199, %v244, 0.0
    %247 = vadd.xlane.f32.xlu0 %v246
    %v248 = vpop.xlane.xlu0 %247
    %v249 = vrcp.pop %v248
    %v250 = vmul.f32 %v248, %v249
    %v251 = vsub.f32 2.0, %v250
    %v252 = vmul.f32 %v249, %v251
    %v253 = vmul.f32 %v241, %v252
    %254 = vst.msk [vmem:[#allocation2] sm:$0xff] %vm235, %v253
    %vm255 = vcmask 261312
    %v256 = vsel %vm255, %v196, -inf
    %257 = vmax.xlane.f32.xlu0 %v256
    %v258 = vpop.xlane.xlu0 %257
    %v259 = vsub.f32 %v196, %v258
    %v260 = vmul.f32 %v259, 1.442695
    %v261 = vpow.pop %v260
    %263 = vrot.lane.b32.xlu0 %v261, 104
    %v264 = vpop.permute.xlu0 %263
    %v266 = vsel %vm199, %v264, 0.0
    %267 = vadd.xlane.f32.xlu0 %v266
    %v268 = vpop.xlane.xlu0 %267
    %v269 = vrcp.pop %v268
    %v270 = vmul.f32 %v268, %v269
    %v271 = vsub.f32 2.0, %v270
    %v272 = vmul.f32 %v269, %v271
    %v273 = vmul.f32 %v261, %v272
    %274 = vst.msk [vmem:[#allocation2] sm:$0xff] %vm255, %v273
    // Predicated region
    $region22: #{tpu_custom_call.1} parent=1 // pred_check
      _
    $region23: #{tpu_custom_call.1} parent=1 // pred_check_branch
      %276 = sbr.rel (0) target = $region25
    $region24: #{tpu_custom_call.1} parent=1 // pred_region
      %s278 = ssub.s32 128, 128
      %279 = vsyncadd [#allocation3], %s278
      %s281 = sshll.u32 [#allocation2], 4
      %s282 = int_to_ptr.vmem [resolvable:$true] %s281
      %284 = dma.vmem_to_hbm [thread:$0]  %s282, 128, %s5, [#allocation3]
    $region25: #{tpu_custom_call.1} parent=1 // pred_fallthru
      _
    // Predicated region
    $region26: #{tpu_custom_call.1} parent=1 // pred_check
      _
    $region27: #{tpu_custom_call.1} parent=1 // pred_check_branch
      %286 = sbr.rel (0) target = $region29
    $region28: #{tpu_custom_call.1} parent=1 // pred_region
      %287 = dma.done [#allocation3], 128
    $region29: #{tpu_custom_call.1} parent=1 // pred_fallthru
      _
    %288 = vsyncpa [#allocation3], 1

</llo_original>
